<compile_context>
chip_gen: v7x
topology: tpu7x:2x2x1
jax: 0.10.0
libtpu: 0.0.40
codegen_flags: <defaults>
</compile_context>

<pallas_src>
import functools

import numpy as np
import jax
import jax.numpy as jnp
from jax.experimental import pallas as pl
from jax.experimental.pallas import tpu as pltpu


# ----------------------------------------------------------------------------
# Kernel
# ----------------------------------------------------------------------------
def spatial_transformer_kernel(x_ref, w1_ref, b1_ref, w2_ref, b2_ref,
                               w3_ref, b3_ref, w4_ref, b4_ref,
                               w5_ref, b5_ref, eye_ref, o_ref,
                               *, n_valid_points):
    C, L = x_ref.shape                    # x tile: (C, bb * Np), bf16
    M = w2_ref.shape[0]
    bb = o_ref.shape[2]                   # point clouds in this grid step
    Np = L // bb                          # padded points per cloud
    Nv = n_valid_points                   # valid (un-padded) points per cloud

    x = x_ref[...]                        # (C, L) bf16
    b1 = b1_ref[...]                      # (M, 1) f32

    # --- conv1 (+BN folded) + ReLU -------------------------------------------
    if C <= 8:
        # Contraction depth C is tiny: do it as C broadcast MACs on the VPU so
        # the MXU only has to run the K=M conv2 contraction.
        w1 = w1_ref[...].astype(jnp.float32)               # (M, C)
        xf = x.astype(jnp.float32)                         # (C, L)
        acc = w1[:, 0:1] * xf[0:1, :]                      # (M, L)
        for c in range(1, C):                              # static, C small
            acc = acc + w1[:, c:c + 1] * xf[c:c + 1, :]
        h = acc + b1
    else:
        h = jnp.dot(w1_ref[...], x,
                    preferred_element_type=jnp.float32) + b1
    h = jnp.maximum(h, 0.0)                                # (M, L) f32

    # --- conv2 (+BN folded) + ReLU: one MXU matmul over all bb*Np lanes ------
    h = jnp.dot(w2_ref[...], h.astype(w2_ref.dtype),
                preferred_element_type=jnp.float32) + b2_ref[...]
    h = jnp.maximum(h, 0.0)                                # (M, L) f32

    # --- global max-pool over points, one XLU lane-reduce per cloud ----------
    # Padded point columns (>= Nv) are simply never reduced over.
    cols = [jnp.max(h[:, b * Np: b * Np + Nv], axis=-1, keepdims=True)
            for b in range(bb)]                            # bb x (M, 1)
    f = cols[0] if bb == 1 else jnp.concatenate(cols, axis=-1)   # (M, bb)

    # --- head: Linear(+BN)+ReLU, Linear(+BN)+ReLU, Linear; weights on left ---
    g = jnp.maximum(jnp.dot(w3_ref[...], f,
                            preferred_element_type=jnp.float32) + b3_ref[...], 0.0)
    g = jnp.maximum(jnp.dot(w4_ref[...], g,
                            preferred_element_type=jnp.float32) + b4_ref[...], 0.0)
    out = (jnp.dot(w5_ref[...], g, preferred_element_type=jnp.float32)
           + b5_ref[...] + eye_ref[...])                   # (CC, bb)

    o_ref[0] = out


# ----------------------------------------------------------------------------
# Parameter handling (eval-mode BN folded into the matmul weights/biases)
# ----------------------------------------------------------------------------
def fold_bn_left(w, b, gamma, beta, mean, var, eps=1e-5):
    """Fold eval-mode BN into a weights-on-the-left (out,in) weight, (out,1) bias."""
    s = gamma / jnp.sqrt(var + eps)
    w_eff = w * s[:, None]                                 # (out, in)
    b_eff = s * (b - mean) + beta                          # (out,)
    return w_eff, b_eff.reshape(-1, 1)


def init_params(key, in_channels, middle_channels):
    """Deterministic parameter init mimicking the module's __init__ shapes."""
    C, M = in_channels, middle_channels
    ks = jax.random.split(key, 10)

    def lin(k, out_f, in_f):
        bound = 1.0 / np.sqrt(in_f)
        kw, kb = jax.random.split(k)
        w = jax.random.uniform(kw, (out_f, in_f), jnp.float32, -bound, bound)
        b = jax.random.uniform(kb, (out_f,), jnp.float32, -bound, bound)
        return w, b

    def bn(n):
        # PyTorch BatchNorm1d defaults: weight=1, bias=0, mean=0, var=1
        return (jnp.ones((n,), jnp.float32), jnp.zeros((n,), jnp.float32),
                jnp.zeros((n,), jnp.float32), jnp.ones((n,), jnp.float32))

    return {
        "conv1": lin(ks[0], M, C), "bn1": bn(M),
        "conv2": lin(ks[1], M, M), "bn2": bn(M),
        "fc1":   lin(ks[2], M, M), "bn3": bn(M),
        "fc2":   lin(ks[3], M, M), "bn4": bn(M),
        "fc3":   lin(ks[4], C * C, M),
    }


def fold_params(params, in_channels):
    C = in_channels
    w1, b1 = fold_bn_left(*params["conv1"], *params["bn1"])
    w2, b2 = fold_bn_left(*params["conv2"], *params["bn2"])
    w3, b3 = fold_bn_left(*params["fc1"], *params["bn3"])
    w4, b4 = fold_bn_left(*params["fc2"], *params["bn4"])
    w5 = params["fc3"][0].astype(jnp.float32)              # (C*C, M)
    b5 = params["fc3"][1].reshape(-1, 1).astype(jnp.float32)
    eye = jnp.eye(C, dtype=jnp.float32).reshape(-1, 1)     # flattened identity column
    # Conv weights in bf16 (MXU/VPU path on bf16-rounded data); biases and the
    # (tiny) head weights stay f32 for accuracy.
    return (w1.astype(jnp.bfloat16), b1.astype(jnp.float32),
            w2.astype(jnp.bfloat16), b2.astype(jnp.float32),
            w3.astype(jnp.float32), b3.astype(jnp.float32),
            w4.astype(jnp.float32), b4.astype(jnp.float32),
            w5, b5, eye)


# ----------------------------------------------------------------------------
# Generation-aware sizing
# ----------------------------------------------------------------------------
def _tpu_generation():
    """Best-effort (vmem_capacity_bytes, tensorcores_per_chip) with safe fallbacks."""
    kind = ""
    try:
        kind = jax.devices()[0].device_kind.lower()
    except Exception:
        pass
    is_v7 = "v7" in kind
    vmem_cap = None
    try:
        info = pltpu.get_tpu_info()
        v = int(getattr(info, "vmem_capacity_bytes", 0) or 0)
        if v > 0:
            vmem_cap = v
    except Exception:
        pass
    if vmem_cap is None:
        # v7x: 64 MiB per TC; v5e/v6e: 128 MiB.  Unknown -> conservative 64 MiB.
        vmem_cap = (64 << 20) if (is_v7 or not kind) else (128 << 20)
    n_tc = 2 if is_v7 else 1                # only v7x has 2 TensorCores per chip
    return vmem_cap, n_tc


def _choose_block_b(B, C, Np, M, vmem_limit_bytes, n_tc):
    """Point clouds processed per grid step.

    Per-element VMEM footprint of one step:
      double-buffered bf16 x tile      : 2 * C * Np * 2
      ~3 live f32 (M, Np) intermediates: 3 * M * Np * 4
      bf16 copy of conv1 output        : M * Np * 2
    Weights/biases/output are tiny.  Keep >= n_tc grid steps so both v7x
    TensorCores get work; single-TC chips (v5e/v6e) get one fat step.
    """
    per_elem = 2 * C * Np * 2 + 3 * M * Np * 4 + M * Np * 2
    budget = max(vmem_limit_bytes // 2, 4 << 20)
    bb = max(1, budget // max(per_elem, 1))
    bb = min(bb, 32, B)                     # bound the static pool-reduce unroll
    if n_tc > 1:
        bb = min(bb, max(1, B // n_tc))
    return int(max(1, bb))


# ----------------------------------------------------------------------------
# Wrapper
# ----------------------------------------------------------------------------
def spatial_transformer(x_ncl, folded, in_channels, middle_channels,
                        block_b=None):
    """x_ncl: (B, C_in, N) float32 (PyTorch NCL layout). Returns (B, C_in, C_in)."""
    B, C, N = x_ncl.shape
    assert C == in_channels
    M = middle_channels
    CC = C * C

    # Pad points to a multiple of 128 so per-step lane extents stay aligned.
    Np = ((N + 127) // 128) * 128

    vmem_cap, n_tc = _tpu_generation()
    vmem_limit = int(min(vmem_cap * 3 // 4, 96 << 20))     # v7x ~48 MiB, v5e/v6e ~96 MiB

    if block_b is None:
        block_b = _choose_block_b(B, C, Np, M, vmem_limit, n_tc)
    G = pl.cdiv(B, block_b)
    B_pad = G * block_b

    # Single fused XLA pass: cast to bf16 (halves HBM bytes of the only large
    # operand), pad, and lay out as (C, B_pad*Np) so batch*points is the lane axis.
    x = x_ncl.astype(jnp.bfloat16)
    if B_pad != B or Np != N:
        x = jnp.pad(x, ((0, B_pad - B), (0, 0), (0, Np - N)))
    x2 = jnp.transpose(x, (1, 0, 2)).reshape(C, B_pad * Np)

    head_flops = 2 * M * M + 2 * M * M + 2 * M * CC
    flops = B_pad * (Np * (2 * C * M + 2 * M * M) + head_flops)
    bytes_accessed = (x2.size * x2.dtype.itemsize
                      + sum(int(a.size) * a.dtype.itemsize for a in folded)
                      + B_pad * CC * 4)
    cost = pl.CostEstimate(flops=int(flops), transcendentals=0,
                           bytes_accessed=int(bytes_accessed))

    def const_spec(a):
        nd = a.ndim
        return pl.BlockSpec(a.shape, lambda i, _nd=nd: (0,) * _nd)

    in_specs = [pl.BlockSpec((C, block_b * Np), lambda i: (0, i))] + \
               [const_spec(a) for a in folded]

    kernel = functools.partial(spatial_transformer_kernel, n_valid_points=N)

    out = pl.pallas_call(
        kernel,
        out_shape=jax.ShapeDtypeStruct((G, CC, block_b), jnp.float32),
        grid_spec=pltpu.PrefetchScalarGridSpec(
            num_scalar_prefetch=0,
            grid=(G,),
            in_specs=in_specs,
            out_specs=pl.BlockSpec((1, CC, block_b), lambda i: (i, 0, 0)),
        ),
        compiler_params=pltpu.CompilerParams(
            dimension_semantics=("parallel",),
            vmem_limit_bytes=vmem_limit),
        cost_estimate=cost,
    )(x2, *folded)

    out = jnp.transpose(out, (0, 2, 1)).reshape(B_pad, CC)[:B]
    return out.reshape(B, C, C)


# ----------------------------------------------------------------------------
# Pure-JAX reference (mirrors the PyTorch eval-mode forward and the kernel's
# bf16-rounded conv inputs / f32 accumulation)
# ----------------------------------------------------------------------------
def reference(x_ncl, folded, in_channels):
    w1, b1, w2, b2, w3, b3, w4, b4, w5, b5, eye = folded
    B, C, N = x_ncl.shape
    x = x_ncl.astype(jnp.bfloat16)                                    # (B, C, N)
    h = jnp.einsum("mc,bcn->bmn", w1.astype(jnp.float32),
                   x.astype(jnp.float32)) + b1[None]
    h = jnp.maximum(h, 0.0)
    h = jnp.einsum("mk,bkn->bmn", w2, h.astype(jnp.bfloat16),
                   preferred_element_type=jnp.float32) + b2[None]
    h = jnp.maximum(h, 0.0)
    f = jnp.max(h, axis=-1)                                           # (B, M)
    g = jnp.maximum(f @ w3.T + b3[:, 0], 0.0)
    g = jnp.maximum(g @ w4.T + b4[:, 0], 0.0)
    out = g @ w5.T + b5[:, 0] + eye[:, 0]
    return out.reshape(B, C, C)


if __name__ == "__main__":
    IN_CHANNELS = 4
    MIDDLE_CHANNELS = 32
    BATCH = 2
    NUM_POINTS = 256

    key = jax.random.PRNGKey(0)
    k_x, k_p = jax.random.split(key)
    x = jax.random.normal(k_x, (BATCH, IN_CHANNELS, NUM_POINTS), jnp.float32)

    params = init_params(k_p, IN_CHANNELS, MIDDLE_CHANNELS)
    folded = fold_params(params, IN_CHANNELS)

    out = spatial_transformer(x, folded, IN_CHANNELS, MIDDLE_CHANNELS)
    out = jax.block_until_ready(out)

    ref = jax.block_until_ready(reference(x, folded, IN_CHANNELS))
    assert out.shape == (BATCH, IN_CHANNELS, IN_CHANNELS), out.shape
    # bf16 conv inputs -> loosened tolerance vs. the (bf16-mirroring) reference.
    np.testing.assert_allclose(np.asarray(out), np.asarray(ref),
                               rtol=1e-2, atol=1e-2)
    print("KERNEL_OK")
</pallas_src>

<mosaic_0001>
module attributes {stable_mosaic.version = 11 : i64} {
  func.func @spatial_transformer_kernel(%arg0: i32, %arg1: memref<4x512xbf16, #tpu.memory_space<vmem>>, %arg2: memref<32x4xbf16, #tpu.memory_space<vmem>>, %arg3: memref<32x1xf32, #tpu.memory_space<vmem>>, %arg4: memref<32x32xbf16, #tpu.memory_space<vmem>>, %arg5: memref<32x1xf32, #tpu.memory_space<vmem>>, %arg6: memref<32x32xf32, #tpu.memory_space<vmem>>, %arg7: memref<32x1xf32, #tpu.memory_space<vmem>>, %arg8: memref<32x32xf32, #tpu.memory_space<vmem>>, %arg9: memref<32x1xf32, #tpu.memory_space<vmem>>, %arg10: memref<16x32xf32, #tpu.memory_space<vmem>>, %arg11: memref<16x1xf32, #tpu.memory_space<vmem>>, %arg12: memref<16x1xf32, #tpu.memory_space<vmem>>, %arg13: memref<1x16x2xf32, #tpu.memory_space<vmem>>) attributes {dimension_semantics = [#tpu.dimension_semantics<parallel>], iteration_bounds = array<i64: 1>, scalar_prefetch = 0 : i64, scratch_operands = 0 : i64, tpu.core_type = #tpu.core_type<tc>, window_params = [{transform_indices = @transform_0, window_bounds = array<i64: 4, 512>}, {pipeline_mode = #tpu.pipeline_mode<synchronous>, transform_indices = @transform_1, window_bounds = array<i64: 32, 4>}, {pipeline_mode = #tpu.pipeline_mode<synchronous>, transform_indices = @transform_2, window_bounds = array<i64: 32, 1>}, {pipeline_mode = #tpu.pipeline_mode<synchronous>, transform_indices = @transform_3, window_bounds = array<i64: 32, 32>}, {pipeline_mode = #tpu.pipeline_mode<synchronous>, transform_indices = @transform_4, window_bounds = array<i64: 32, 1>}, {pipeline_mode = #tpu.pipeline_mode<synchronous>, transform_indices = @transform_5, window_bounds = array<i64: 32, 32>}, {pipeline_mode = #tpu.pipeline_mode<synchronous>, transform_indices = @transform_6, window_bounds = array<i64: 32, 1>}, {pipeline_mode = #tpu.pipeline_mode<synchronous>, transform_indices = @transform_7, window_bounds = array<i64: 32, 32>}, {pipeline_mode = #tpu.pipeline_mode<synchronous>, transform_indices = @transform_8, window_bounds = array<i64: 32, 1>}, {pipeline_mode = #tpu.pipeline_mode<synchronous>, transform_indices = @transform_9, window_bounds = array<i64: 16, 32>}, {pipeline_mode = #tpu.pipeline_mode<synchronous>, transform_indices = @transform_10, window_bounds = array<i64: 16, 1>}, {pipeline_mode = #tpu.pipeline_mode<synchronous>, transform_indices = @transform_11, window_bounds = array<i64: 16, 1>}, {transform_indices = @transform_12, window_bounds = array<i64: 1, 16, 2>}]} {
    %c0 = arith.constant 0 : index
    %c0_0 = arith.constant 0 : index
    %0 = vector.load %arg1[%c0, %c0_0] : memref<4x512xbf16, #tpu.memory_space<vmem>>, vector<4x512xbf16>
    %c0_1 = arith.constant 0 : index
    %c0_2 = arith.constant 0 : index
    %1 = vector.load %arg3[%c0_1, %c0_2] : memref<32x1xf32, #tpu.memory_space<vmem>>, vector<32x1xf32>
    %c0_3 = arith.constant 0 : index
    %c0_4 = arith.constant 0 : index
    %2 = vector.load %arg2[%c0_3, %c0_4] : memref<32x4xbf16, #tpu.memory_space<vmem>>, vector<32x4xbf16>
    %3 = arith.extf %2 : vector<32x4xbf16> to vector<32x4xf32>
    %4 = arith.extf %0 : vector<4x512xbf16> to vector<4x512xf32>
    %5 = vector.extract_strided_slice %3 {offsets = [0, 0], sizes = [32, 1], strides = [1, 1]} : vector<32x4xf32> to vector<32x1xf32>
    %6 = vector.extract_strided_slice %4 {offsets = [0, 0], sizes = [1, 512], strides = [1, 1]} : vector<4x512xf32> to vector<1x512xf32>
    %7 = vector.broadcast %5 : vector<32x1xf32> to vector<32x512xf32>
    %8 = vector.broadcast %6 : vector<1x512xf32> to vector<32x512xf32>
    %9 = arith.mulf %7, %8 : vector<32x512xf32>
    %10 = vector.extract_strided_slice %3 {offsets = [0, 1], sizes = [32, 1], strides = [1, 1]} : vector<32x4xf32> to vector<32x1xf32>
    %11 = vector.extract_strided_slice %4 {offsets = [1, 0], sizes = [1, 512], strides = [1, 1]} : vector<4x512xf32> to vector<1x512xf32>
    %12 = vector.broadcast %10 : vector<32x1xf32> to vector<32x512xf32>
    %13 = vector.broadcast %11 : vector<1x512xf32> to vector<32x512xf32>
    %14 = arith.mulf %12, %13 : vector<32x512xf32>
    %15 = arith.addf %9, %14 : vector<32x512xf32>
    %16 = vector.extract_strided_slice %3 {offsets = [0, 2], sizes = [32, 1], strides = [1, 1]} : vector<32x4xf32> to vector<32x1xf32>
    %17 = vector.extract_strided_slice %4 {offsets = [2, 0], sizes = [1, 512], strides = [1, 1]} : vector<4x512xf32> to vector<1x512xf32>
    %18 = vector.broadcast %16 : vector<32x1xf32> to vector<32x512xf32>
    %19 = vector.broadcast %17 : vector<1x512xf32> to vector<32x512xf32>
    %20 = arith.mulf %18, %19 : vector<32x512xf32>
    %21 = arith.addf %15, %20 : vector<32x512xf32>
    %22 = vector.extract_strided_slice %3 {offsets = [0, 3], sizes = [32, 1], strides = [1, 1]} : vector<32x4xf32> to vector<32x1xf32>
    %23 = vector.extract_strided_slice %4 {offsets = [3, 0], sizes = [1, 512], strides = [1, 1]} : vector<4x512xf32> to vector<1x512xf32>
    %24 = vector.broadcast %22 : vector<32x1xf32> to vector<32x512xf32>
    %25 = vector.broadcast %23 : vector<1x512xf32> to vector<32x512xf32>
    %26 = arith.mulf %24, %25 : vector<32x512xf32>
    %27 = arith.addf %21, %26 : vector<32x512xf32>
    %28 = vector.broadcast %1 : vector<32x1xf32> to vector<32x512xf32>
    %29 = arith.addf %27, %28 : vector<32x512xf32>
    %cst = arith.constant 0.000000e+00 : f32
    %30 = vector.broadcast %cst : f32 to vector<32x512xf32>
    %31 = arith.maximumf %29, %30 : vector<32x512xf32>
    %c0_5 = arith.constant 0 : index
    %c0_6 = arith.constant 0 : index
    %32 = vector.load %arg4[%c0_5, %c0_6] : memref<32x32xbf16, #tpu.memory_space<vmem>>, vector<32x32xbf16>
    %33 = arith.truncf %31 : vector<32x512xf32> to vector<32x512xbf16>
    %cst_7 = arith.constant dense<0.000000e+00> : vector<32x512xf32>
    %34 = tpu.matmul %32, %33, %cst_7 {dimension_numbers = #tpu.dot_dimension_numbers<[1], [0], [0], [1], [0, 0, 1, 1], [], []>} : vector<32x32xbf16>, vector<32x512xbf16>, vector<32x512xf32> -> vector<32x512xf32>
    %c0_8 = arith.constant 0 : index
    %c0_9 = arith.constant 0 : index
    %35 = vector.load %arg5[%c0_8, %c0_9] : memref<32x1xf32, #tpu.memory_space<vmem>>, vector<32x1xf32>
    %36 = vector.broadcast %35 : vector<32x1xf32> to vector<32x512xf32>
    %37 = arith.addf %34, %36 : vector<32x512xf32>
    %cst_10 = arith.constant 0.000000e+00 : f32
    %38 = vector.broadcast %cst_10 : f32 to vector<32x512xf32>
    %39 = arith.maximumf %37, %38 : vector<32x512xf32>
    %40 = vector.extract_strided_slice %39 {offsets = [0, 0], sizes = [32, 256], strides = [1, 1]} : vector<32x512xf32> to vector<32x256xf32>
    %cst_11 = arith.constant dense<0xFF800000> : vector<32xf32>
    %41 = vector.multi_reduction <maximumf>, %40, %cst_11 [1] : vector<32x256xf32> to vector<32xf32>
    %42 = vector.shape_cast %41 : vector<32xf32> to vector<32x1xf32>
    %43 = vector.extract_strided_slice %39 {offsets = [0, 256], sizes = [32, 256], strides = [1, 1]} : vector<32x512xf32> to vector<32x256xf32>
    %cst_12 = arith.constant dense<0xFF800000> : vector<32xf32>
    %44 = vector.multi_reduction <maximumf>, %43, %cst_12 [1] : vector<32x256xf32> to vector<32xf32>
    %45 = vector.shape_cast %44 : vector<32xf32> to vector<32x1xf32>
    %46 = tpu.concatenate %42, %45 in 1 : vector<32x1xf32>, vector<32x1xf32> -> vector<32x2xf32>
    %c0_13 = arith.constant 0 : index
    %c0_14 = arith.constant 0 : index
    %47 = vector.load %arg6[%c0_13, %c0_14] : memref<32x32xf32, #tpu.memory_space<vmem>>, vector<32x32xf32>
    %cst_15 = arith.constant dense<0.000000e+00> : vector<32x2xf32>
    %48 = tpu.matmul %47, %46, %cst_15 {dimension_numbers = #tpu.dot_dimension_numbers<[1], [0], [0], [1], [0, 0, 1, 1], [], []>} : vector<32x32xf32>, vector<32x2xf32>, vector<32x2xf32> -> vector<32x2xf32>
    %c0_16 = arith.constant 0 : index
    %c0_17 = arith.constant 0 : index
    %49 = vector.load %arg7[%c0_16, %c0_17] : memref<32x1xf32, #tpu.memory_space<vmem>>, vector<32x1xf32>
    %50 = vector.broadcast %49 : vector<32x1xf32> to vector<32x2xf32>
    %51 = arith.addf %48, %50 : vector<32x2xf32>
    %cst_18 = arith.constant 0.000000e+00 : f32
    %52 = vector.broadcast %cst_18 : f32 to vector<32x2xf32>
    %53 = arith.maximumf %51, %52 : vector<32x2xf32>
    %c0_19 = arith.constant 0 : index
    %c0_20 = arith.constant 0 : index
    %54 = vector.load %arg8[%c0_19, %c0_20] : memref<32x32xf32, #tpu.memory_space<vmem>>, vector<32x32xf32>
    %cst_21 = arith.constant dense<0.000000e+00> : vector<32x2xf32>
    %55 = tpu.matmul %54, %53, %cst_21 {dimension_numbers = #tpu.dot_dimension_numbers<[1], [0], [0], [1], [0, 0, 1, 1], [], []>} : vector<32x32xf32>, vector<32x2xf32>, vector<32x2xf32> -> vector<32x2xf32>
    %c0_22 = arith.constant 0 : index
    %c0_23 = arith.constant 0 : index
    %56 = vector.load %arg9[%c0_22, %c0_23] : memref<32x1xf32, #tpu.memory_space<vmem>>, vector<32x1xf32>
    %57 = vector.broadcast %56 : vector<32x1xf32> to vector<32x2xf32>
    %58 = arith.addf %55, %57 : vector<32x2xf32>
    %cst_24 = arith.constant 0.000000e+00 : f32
    %59 = vector.broadcast %cst_24 : f32 to vector<32x2xf32>
    %60 = arith.maximumf %58, %59 : vector<32x2xf32>
    %c0_25 = arith.constant 0 : index
    %c0_26 = arith.constant 0 : index
    %61 = vector.load %arg10[%c0_25, %c0_26] : memref<16x32xf32, #tpu.memory_space<vmem>>, vector<16x32xf32>
    %cst_27 = arith.constant dense<0.000000e+00> : vector<16x2xf32>
    %62 = tpu.matmul %61, %60, %cst_27 {dimension_numbers = #tpu.dot_dimension_numbers<[1], [0], [0], [1], [0, 0, 1, 1], [], []>} : vector<16x32xf32>, vector<32x2xf32>, vector<16x2xf32> -> vector<16x2xf32>
    %c0_28 = arith.constant 0 : index
    %c0_29 = arith.constant 0 : index
    %63 = vector.load %arg11[%c0_28, %c0_29] : memref<16x1xf32, #tpu.memory_space<vmem>>, vector<16x1xf32>
    %64 = vector.broadcast %63 : vector<16x1xf32> to vector<16x2xf32>
    %65 = arith.addf %62, %64 : vector<16x2xf32>
    %c0_30 = arith.constant 0 : index
    %c0_31 = arith.constant 0 : index
    %66 = vector.load %arg12[%c0_30, %c0_31] : memref<16x1xf32, #tpu.memory_space<vmem>>, vector<16x1xf32>
    %67 = vector.broadcast %66 : vector<16x1xf32> to vector<16x2xf32>
    %68 = arith.addf %65, %67 : vector<16x2xf32>
    %c0_32 = arith.constant 0 : index
    %c0_33 = arith.constant 0 : index
    %c0_34 = arith.constant 0 : index
    %69 = vector.load %arg13[%c0_32, %c0_33, %c0_34] : memref<1x16x2xf32, #tpu.memory_space<vmem>>, vector<1x16x2xf32>
    %70 = vector.shape_cast %69 : vector<1x16x2xf32> to vector<16x2xf32>
    %71 = vector.shape_cast %68 : vector<16x2xf32> to vector<1x16x2xf32>
    tpu.vector_store %arg13[%c0_32, %c0_33, %c0_34], %71 {strides = array<i32>} : memref<1x16x2xf32, #tpu.memory_space<vmem>>, vector<1x16x2xf32>,
    return
  }
  func.func @transform_0(%arg0: i32) -> (i32, i32) {
    %c0_i32 = arith.constant 0 : i32
    %c0_i32_0 = arith.constant 0 : i32
    return %c0_i32, %arg0 : i32, i32
  }
  func.func @transform_1(%arg0: i32) -> (i32, i32) {
    %c0_i32 = arith.constant 0 : i32
    %c0_i32_0 = arith.constant 0 : i32
    %c0_i32_1 = arith.constant 0 : i32
    return %c0_i32, %c0_i32_0 : i32, i32
  }
  func.func @transform_2(%arg0: i32) -> (i32, i32) {
    %c0_i32 = arith.constant 0 : i32
    %c0_i32_0 = arith.constant 0 : i32
    %c0_i32_1 = arith.constant 0 : i32
    return %c0_i32, %c0_i32_0 : i32, i32
  }
  func.func @transform_3(%arg0: i32) -> (i32, i32) {
    %c0_i32 = arith.constant 0 : i32
    %c0_i32_0 = arith.constant 0 : i32
    %c0_i32_1 = arith.constant 0 : i32
    return %c0_i32, %c0_i32_0 : i32, i32
  }
  func.func @transform_4(%arg0: i32) -> (i32, i32) {
    %c0_i32 = arith.constant 0 : i32
    %c0_i32_0 = arith.constant 0 : i32
    %c0_i32_1 = arith.constant 0 : i32
    return %c0_i32, %c0_i32_0 : i32, i32
  }
  func.func @transform_5(%arg0: i32) -> (i32, i32) {
    %c0_i32 = arith.constant 0 : i32
    %c0_i32_0 = arith.constant 0 : i32
    %c0_i32_1 = arith.constant 0 : i32
    return %c0_i32, %c0_i32_0 : i32, i32
  }
  func.func @transform_6(%arg0: i32) -> (i32, i32) {
    %c0_i32 = arith.constant 0 : i32
    %c0_i32_0 = arith.constant 0 : i32
    %c0_i32_1 = arith.constant 0 : i32
    return %c0_i32, %c0_i32_0 : i32, i32
  }
  func.func @transform_7(%arg0: i32) -> (i32, i32) {
    %c0_i32 = arith.constant 0 : i32
    %c0_i32_0 = arith.constant 0 : i32
    %c0_i32_1 = arith.constant 0 : i32
    return %c0_i32, %c0_i32_0 : i32, i32
  }
  func.func @transform_8(%arg0: i32) -> (i32, i32) {
    %c0_i32 = arith.constant 0 : i32
    %c0_i32_0 = arith.constant 0 : i32
    %c0_i32_1 = arith.constant 0 : i32
    return %c0_i32, %c0_i32_0 : i32, i32
  }
  func.func @transform_9(%arg0: i32) -> (i32, i32) {
    %c0_i32 = arith.constant 0 : i32
    %c0_i32_0 = arith.constant 0 : i32
    %c0_i32_1 = arith.constant 0 : i32
    return %c0_i32, %c0_i32_0 : i32, i32
  }
  func.func @transform_10(%arg0: i32) -> (i32, i32) {
    %c0_i32 = arith.constant 0 : i32
    %c0_i32_0 = arith.constant 0 : i32
    %c0_i32_1 = arith.constant 0 : i32
    return %c0_i32, %c0_i32_0 : i32, i32
  }
  func.func @transform_11(%arg0: i32) -> (i32, i32) {
    %c0_i32 = arith.constant 0 : i32
    %c0_i32_0 = arith.constant 0 : i32
    %c0_i32_1 = arith.constant 0 : i32
    return %c0_i32, %c0_i32_0 : i32, i32
  }
  func.func @transform_12(%arg0: i32) -> (i32, i32, i32) {
    %c0_i32 = arith.constant 0 : i32
    %c0_i32_0 = arith.constant 0 : i32
    %c0_i32_1 = arith.constant 0 : i32
    return %arg0, %c0_i32, %c0_i32_0 : i32, i32, i32
  }
}

</mosaic_0001>

<llo_original>
// kernel: tpu_custom_call.1
$region0: #{tpu_custom_call.1}
  #allocation0 [shape = 'u32[]', space=smem, size = 0x4, offset = 0x4, fixed_abs, tag = 'smem constant byte address 0x4 - core index']
  #allocation1 [shape = 'u32[144,128]{1,0:T(1,128)}', space=vmem, size = 0x12000, scoped, tag = 'internal scratch']
  %s0 = inlined_call_operand.hbm [shape: bf16[4,512], index: 0, kind: input, shape index: {}]
  %s1 = inlined_call_operand.hbm [shape: bf16[32,4], index: 1, kind: input, shape index: {}]
  %s2 = inlined_call_operand.hbm [shape: f32[32,1], index: 2, kind: input, shape index: {}]
  %s3 = inlined_call_operand.hbm [shape: bf16[32,32], index: 3, kind: input, shape index: {}]
  %s4 = inlined_call_operand.hbm [shape: f32[32,1], index: 4, kind: input, shape index: {}]
  %s5 = inlined_call_operand.hbm [shape: f32[32,32], index: 5, kind: input, shape index: {}]
  %s6 = inlined_call_operand.hbm [shape: f32[32,1], index: 6, kind: input, shape index: {}]
  %s7 = inlined_call_operand.hbm [shape: f32[32,32], index: 7, kind: input, shape index: {}]
  %s8 = inlined_call_operand.hbm [shape: f32[32,1], index: 8, kind: input, shape index: {}]
  %s9 = inlined_call_operand.hbm [shape: f32[16,32], index: 9, kind: input, shape index: {}]
  %s10 = inlined_call_operand.hbm [shape: f32[16,1], index: 10, kind: input, shape index: {}]
  %s11 = inlined_call_operand.hbm [shape: f32[16,1], index: 11, kind: input, shape index: {}]
  %s12 = inlined_call_operand.hbm [shape: f32[1,16,2], index: 12, kind: output, shape index: {}]
  %s13 = sld [smem:[#allocation0]]
  $region106: #{tpu_custom_call.1} parent=0
    _
  %s15 = ssub.s32 1, %s13
  %s16 = scalar_select 0, %s15, %s13
  $region1: #{tpu_custom_call.1} parent=0
    #allocation2 [shape = 'u8[4096]{0}', space=vmem, size = 0x1000, scoped, tag = 'input window, operand 0, single buffered']
    #allocation3 [shape = 's32[1]{0}', space=sflag, size = 0x4, scoped, tag = 'scoped memory for tpu_custom_call.1']
    #allocation4 [shape = 's32[1]{0}', space=sflag, size = 0x4, scoped, tag = 'scoped memory for tpu_custom_call.1']
    #allocation5 [shape = 'u8[8192]{0}', space=vmem, size = 0x2000, scoped, tag = 'input window, operand 1, single buffered']
    #allocation6 [shape = 's32[1]{0}', space=sflag, size = 0x4, scoped, tag = 'scoped memory for tpu_custom_call.1']
    #allocation7 [shape = 'u8[16384]{0}', space=vmem, size = 0x4000, scoped, tag = 'input window, operand 2, single buffered']
    #allocation8 [shape = 'u8[8192]{0}', space=vmem, size = 0x2000, scoped, tag = 'input window, operand 3, single buffered']
    #allocation9 [shape = 's32[1]{0}', space=sflag, size = 0x4, scoped, tag = 'scoped memory for tpu_custom_call.1']
    #allocation10 [shape = 'u8[16384]{0}', space=vmem, size = 0x4000, scoped, tag = 'input window, operand 4, single buffered']
    #allocation11 [shape = 'u8[16384]{0}', space=vmem, size = 0x4000, scoped, tag = 'input window, operand 5, single buffered']
    #allocation12 [shape = 's32[1]{0}', space=sflag, size = 0x4, scoped, tag = 'scoped memory for tpu_custom_call.1']
    #allocation13 [shape = 'u8[16384]{0}', space=vmem, size = 0x4000, scoped, tag = 'input window, operand 6, single buffered']
    #allocation14 [shape = 'u8[16384]{0}', space=vmem, size = 0x4000, scoped, tag = 'input window, operand 7, single buffered']
    #allocation15 [shape = 's32[1]{0}', space=sflag, size = 0x4, scoped, tag = 'scoped memory for tpu_custom_call.1']
    #allocation16 [shape = 'u8[16384]{0}', space=vmem, size = 0x4000, scoped, tag = 'input window, operand 8, single buffered']
    #allocation17 [shape = 'u8[8192]{0}', space=vmem, size = 0x2000, scoped, tag = 'input window, operand 9, single buffered']
    #allocation18 [shape = 's32[1]{0}', space=sflag, size = 0x4, scoped, tag = 'scoped memory for tpu_custom_call.1']
    #allocation19 [shape = 'u8[8192]{0}', space=vmem, size = 0x2000, scoped, tag = 'input window, operand 10, single buffered']
    #allocation20 [shape = 'u8[8192]{0}', space=vmem, size = 0x2000, scoped, tag = 'input window, operand 11, single buffered']
    #allocation21 [shape = 's32[1]{0}', space=sflag, size = 0x4, scoped, tag = 'scoped memory for tpu_custom_call.1']
    #allocation22 [shape = 'u8[8192]{0}', space=vmem, size = 0x2000, scoped, tag = 'output window, operand 0, single buffered']
    %17 = vsyncpa [#allocation3], 0
    %18 = vsyncpa [#allocation6], 0
    %19 = vsyncpa [#allocation9], 0
    %20 = vsyncpa [#allocation12], 0
    %21 = vsyncpa [#allocation15], 0
    %22 = vsyncpa [#allocation18], 0
    %23 = vsyncpa [#allocation21], 0
    %24 = vsyncpa [#allocation4], 0
    // Predicated region
    $region2: #{tpu_custom_call.1} parent=1 // pred_check
      _
    $region3: #{tpu_custom_call.1} parent=1 // pred_check_branch
      %26 = sbr.rel (0) target = $region5
    $region4: #{tpu_custom_call.1} parent=1 // pred_region
      %s28 = ssub.s32 128, 128
      %29 = vsyncadd [#allocation3], %s28
      %s31 = sshll.u32 [#allocation2], 4
      %s32 = int_to_ptr.vmem [resolvable:$true] %s31
      %34 = dma.hbm_to_vmem [thread:$0]  %s0, 128, %s32, [#allocation3]
    $region5: #{tpu_custom_call.1} parent=1 // pred_fallthru
      _
    // Predicated region
    $region6: #{tpu_custom_call.1} parent=1 // pred_check
      _
    $region7: #{tpu_custom_call.1} parent=1 // pred_check_branch
      %36 = sbr.rel (0) target = $region9
    $region8: #{tpu_custom_call.1} parent=1 // pred_region
      %s38 = ssub.s32 256, 256
      %39 = vsyncadd [#allocation6], %s38
      %s40 = sshll.u32 [#allocation5], 4
      %s41 = int_to_ptr.vmem [resolvable:$true] %s40
      %46 = dma.hbm_to_vmem [thread:$0]  %s1, 256, %s41, [#allocation6], 64, 64, 4
    $region9: #{tpu_custom_call.1} parent=1 // pred_fallthru
      _
    // Predicated region
    $region10: #{tpu_custom_call.1} parent=1 // pred_check
      _
    $region11: #{tpu_custom_call.1} parent=1 // pred_check_branch
      %48 = sbr.rel (0) target = $region13
    $region12: #{tpu_custom_call.1} parent=1 // pred_region
      %s50 = ssub.s32 512, 512
      %51 = vsyncadd [#allocation6], %s50
      %s52 = sshll.u32 [#allocation7], 4
      %s53 = int_to_ptr.vmem [resolvable:$true] %s52
      %58 = dma.hbm_to_vmem [thread:$0]  %s2, 512, %s53, [#allocation6], 128, 128, 8
    $region13: #{tpu_custom_call.1} parent=1 // pred_fallthru
      _
    // Predicated region
    $region14: #{tpu_custom_call.1} parent=1 // pred_check
      _
    $region15: #{tpu_custom_call.1} parent=1 // pred_check_branch
      %60 = sbr.rel (0) target = $region17
    $region16: #{tpu_custom_call.1} parent=1 // pred_region
      %s62 = ssub.s32 256, 256
      %63 = vsyncadd [#allocation9], %s62
      %s64 = sshll.u32 [#allocation8], 4
      %s65 = int_to_ptr.vmem [resolvable:$true] %s64
      %70 = dma.hbm_to_vmem [thread:$0]  %s3, 256, %s65, [#allocation9], 64, 64, 4
    $region17: #{tpu_custom_call.1} parent=1 // pred_fallthru
      _
    // Predicated region
    $region18: #{tpu_custom_call.1} parent=1 // pred_check
      _
    $region19: #{tpu_custom_call.1} parent=1 // pred_check_branch
      %72 = sbr.rel (0) target = $region21
    $region20: #{tpu_custom_call.1} parent=1 // pred_region
      %s74 = ssub.s32 512, 512
      %75 = vsyncadd [#allocation9], %s74
      %s76 = sshll.u32 [#allocation10], 4
      %s77 = int_to_ptr.vmem [resolvable:$true] %s76
      %82 = dma.hbm_to_vmem [thread:$0]  %s4, 512, %s77, [#allocation9], 128, 128, 8
    $region21: #{tpu_custom_call.1} parent=1 // pred_fallthru
      _
    // Predicated region
    $region22: #{tpu_custom_call.1} parent=1 // pred_check
      _
    $region23: #{tpu_custom_call.1} parent=1 // pred_check_branch
      %84 = sbr.rel (0) target = $region25
    $region24: #{tpu_custom_call.1} parent=1 // pred_region
      %s86 = ssub.s32 512, 512
      %87 = vsyncadd [#allocation12], %s86
      %s88 = sshll.u32 [#allocation11], 4
      %s89 = int_to_ptr.vmem [resolvable:$true] %s88
      %94 = dma.hbm_to_vmem [thread:$0]  %s5, 512, %s89, [#allocation12], 128, 128, 8
    $region25: #{tpu_custom_call.1} parent=1 // pred_fallthru
      _
    // Predicated region
    $region26: #{tpu_custom_call.1} parent=1 // pred_check
      _
    $region27: #{tpu_custom_call.1} parent=1 // pred_check_branch
      %96 = sbr.rel (0) target = $region29
    $region28: #{tpu_custom_call.1} parent=1 // pred_region
      %s98 = ssub.s32 512, 512
      %99 = vsyncadd [#allocation12], %s98
      %s100 = sshll.u32 [#allocation13], 4
      %s101 = int_to_ptr.vmem [resolvable:$true] %s100
      %106 = dma.hbm_to_vmem [thread:$0]  %s6, 512, %s101, [#allocation12], 128, 128, 8
    $region29: #{tpu_custom_call.1} parent=1 // pred_fallthru
      _
    // Predicated region
    $region30: #{tpu_custom_call.1} parent=1 // pred_check
      _
    $region31: #{tpu_custom_call.1} parent=1 // pred_check_branch
      %108 = sbr.rel (0) target = $region33
    $region32: #{tpu_custom_call.1} parent=1 // pred_region
      %s110 = ssub.s32 512, 512
      %111 = vsyncadd [#allocation15], %s110
      %s112 = sshll.u32 [#allocation14], 4
      %s113 = int_to_ptr.vmem [resolvable:$true] %s112
      %118 = dma.hbm_to_vmem [thread:$0]  %s7, 512, %s113, [#allocation15], 128, 128, 8
    $region33: #{tpu_custom_call.1} parent=1 // pred_fallthru
      _
    // Predicated region
    $region34: #{tpu_custom_call.1} parent=1 // pred_check
      _
    $region35: #{tpu_custom_call.1} parent=1 // pred_check_branch
      %120 = sbr.rel (0) target = $region37
    $region36: #{tpu_custom_call.1} parent=1 // pred_region
      %s122 = ssub.s32 512, 512
      %123 = vsyncadd [#allocation15], %s122
      %s124 = sshll.u32 [#allocation16], 4
      %s125 = int_to_ptr.vmem [resolvable:$true] %s124
      %130 = dma.hbm_to_vmem [thread:$0]  %s8, 512, %s125, [#allocation15], 128, 128, 8
    $region37: #{tpu_custom_call.1} parent=1 // pred_fallthru
      _
    // Predicated region
    $region38: #{tpu_custom_call.1} parent=1 // pred_check
      _
    $region39: #{tpu_custom_call.1} parent=1 // pred_check_branch
      %132 = sbr.rel (0) target = $region41
    $region40: #{tpu_custom_call.1} parent=1 // pred_region
      %s134 = ssub.s32 256, 256
      %135 = vsyncadd [#allocation18], %s134
      %s136 = sshll.u32 [#allocation17], 4
      %s137 = int_to_ptr.vmem [resolvable:$true] %s136
      %142 = dma.hbm_to_vmem [thread:$0]  %s9, 256, %s137, [#allocation18], 128, 128, 8
    $region41: #{tpu_custom_call.1} parent=1 // pred_fallthru
      _
    // Predicated region
    $region42: #{tpu_custom_call.1} parent=1 // pred_check
      _
    $region43: #{tpu_custom_call.1} parent=1 // pred_check_branch
      %144 = sbr.rel (0) target = $region45
    $region44: #{tpu_custom_call.1} parent=1 // pred_region
      %s146 = ssub.s32 256, 256
      %147 = vsyncadd [#allocation18], %s146
      %s148 = sshll.u32 [#allocation19], 4
      %s149 = int_to_ptr.vmem [resolvable:$true] %s148
      %154 = dma.hbm_to_vmem [thread:$0]  %s10, 256, %s149, [#allocation18], 128, 128, 8
    $region45: #{tpu_custom_call.1} parent=1 // pred_fallthru
      _
    // Predicated region
    $region46: #{tpu_custom_call.1} parent=1 // pred_check
      _
    $region47: #{tpu_custom_call.1} parent=1 // pred_check_branch
      %156 = sbr.rel (0) target = $region49
    $region48: #{tpu_custom_call.1} parent=1 // pred_region
      %s158 = ssub.s32 256, 256
      %159 = vsyncadd [#allocation21], %s158
      %s160 = sshll.u32 [#allocation20], 4
      %s161 = int_to_ptr.vmem [resolvable:$true] %s160
      %166 = dma.hbm_to_vmem [thread:$0]  %s11, 256, %s161, [#allocation21], 128, 128, 8
    $region49: #{tpu_custom_call.1} parent=1 // pred_fallthru
      _
    // Predicated region
    $region50: #{tpu_custom_call.1} parent=1 // pred_check
      _
    $region51: #{tpu_custom_call.1} parent=1 // pred_check_branch
      %168 = sbr.rel (0) target = $region53
    $region52: #{tpu_custom_call.1} parent=1 // pred_region
      %169 = dma.done [#allocation3], 128
    $region53: #{tpu_custom_call.1} parent=1 // pred_fallthru
      _
    // Predicated region
    $region54: #{tpu_custom_call.1} parent=1 // pred_check
      _
    $region55: #{tpu_custom_call.1} parent=1 // pred_check_branch
      %171 = sbr.rel (0) target = $region57
    $region56: #{tpu_custom_call.1} parent=1 // pred_region
      %172 = dma.done [#allocation6], 256
    $region57: #{tpu_custom_call.1} parent=1 // pred_fallthru
      _
    // Predicated region
    $region58: #{tpu_custom_call.1} parent=1 // pred_check
      _
    $region59: #{tpu_custom_call.1} parent=1 // pred_check_branch
      %174 = sbr.rel (0) target = $region61
    $region60: #{tpu_custom_call.1} parent=1 // pred_region
      %175 = dma.done [#allocation6], 512
    $region61: #{tpu_custom_call.1} parent=1 // pred_fallthru
      _
    // Predicated region
    $region62: #{tpu_custom_call.1} parent=1 // pred_check
      _
    $region63: #{tpu_custom_call.1} parent=1 // pred_check_branch
      %177 = sbr.rel (0) target = $region65
    $region64: #{tpu_custom_call.1} parent=1 // pred_region
      %178 = dma.done [#allocation9], 256
    $region65: #{tpu_custom_call.1} parent=1 // pred_fallthru
      _
    // Predicated region
    $region66: #{tpu_custom_call.1} parent=1 // pred_check
      _
    $region67: #{tpu_custom_call.1} parent=1 // pred_check_branch
      %180 = sbr.rel (0) target = $region69
    $region68: #{tpu_custom_call.1} parent=1 // pred_region
      %181 = dma.done [#allocation9], 512
    $region69: #{tpu_custom_call.1} parent=1 // pred_fallthru
      _
    // Predicated region
    $region70: #{tpu_custom_call.1} parent=1 // pred_check
      _
    $region71: #{tpu_custom_call.1} parent=1 // pred_check_branch
      %183 = sbr.rel (0) target = $region73
    $region72: #{tpu_custom_call.1} parent=1 // pred_region
      %184 = dma.done [#allocation12], 512
    $region73: #{tpu_custom_call.1} parent=1 // pred_fallthru
      _
    // Predicated region
    $region74: #{tpu_custom_call.1} parent=1 // pred_check
      _
    $region75: #{tpu_custom_call.1} parent=1 // pred_check_branch
      %186 = sbr.rel (0) target = $region77
    $region76: #{tpu_custom_call.1} parent=1 // pred_region
      %187 = dma.done [#allocation12], 512
    $region77: #{tpu_custom_call.1} parent=1 // pred_fallthru
      _
    // Predicated region
    $region78: #{tpu_custom_call.1} parent=1 // pred_check
      _
    $region79: #{tpu_custom_call.1} parent=1 // pred_check_branch
      %189 = sbr.rel (0) target = $region81
    $region80: #{tpu_custom_call.1} parent=1 // pred_region
      %190 = dma.done [#allocation15], 512
    $region81: #{tpu_custom_call.1} parent=1 // pred_fallthru
      _
    // Predicated region
    $region82: #{tpu_custom_call.1} parent=1 // pred_check
      _
    $region83: #{tpu_custom_call.1} parent=1 // pred_check_branch
      %192 = sbr.rel (0) target = $region85
    $region84: #{tpu_custom_call.1} parent=1 // pred_region
      %193 = dma.done [#allocation15], 512
    $region85: #{tpu_custom_call.1} parent=1 // pred_fallthru
      _
    // Predicated region
    $region86: #{tpu_custom_call.1} parent=1 // pred_check
      _
    $region87: #{tpu_custom_call.1} parent=1 // pred_check_branch
      %195 = sbr.rel (0) target = $region89
    $region88: #{tpu_custom_call.1} parent=1 // pred_region
      %196 = dma.done [#allocation18], 256
    $region89: #{tpu_custom_call.1} parent=1 // pred_fallthru
      _
    // Predicated region
    $region90: #{tpu_custom_call.1} parent=1 // pred_check
      _
    $region91: #{tpu_custom_call.1} parent=1 // pred_check_branch
      %198 = sbr.rel (0) target = $region93
    $region92: #{tpu_custom_call.1} parent=1 // pred_region
      %199 = dma.done [#allocation18], 256
    $region93: #{tpu_custom_call.1} parent=1 // pred_fallthru
      _
    // Predicated region
    $region94: #{tpu_custom_call.1} parent=1 // pred_check
      _
    $region95: #{tpu_custom_call.1} parent=1 // pred_check_branch
      %201 = sbr.rel (0) target = $region97
    $region96: #{tpu_custom_call.1} parent=1 // pred_region
      %202 = dma.done [#allocation21], 256
    $region97: #{tpu_custom_call.1} parent=1 // pred_fallthru
      _
    %v204 = vld [vmem:[#allocation2] sm:$0xff]
    %v205 = vld [vmem:[#allocation7] sm:$0xff]
    %v206 = vld [vmem:[#allocation7 + $0x8] sm:$0xff]
    %v207 = vld [vmem:[#allocation7 + $0x10] sm:$0xff]
    %v208 = vld [vmem:[#allocation7 + $0x18] sm:$0xff]
    %v209 = vld [vmem:[#allocation5] sm:$0xf]
    %v210 = vld [vmem:[#allocation5 + $0x4] sm:$0xf]
    %v211 = vld [vmem:[#allocation5 + $0x8] sm:$0xf]
    %v212 = vld [vmem:[#allocation5 + $0xc] sm:$0xf]
    %v213 = vunpack.c.l.bf16 %v209
    %v214 = vunpack.c.l.bf16 %v210
    %v215 = vunpack.c.l.bf16 %v211
    %v216 = vunpack.c.l.bf16 %v212
    %v217 = vunpack.c.l.bf16 %v204
    %v218 = vunpack.c.h.bf16 %v204
    %220 = vset.pattern.permute.xlu0 0
    %221 = vperm.xlu0 %220, %v213
    %v222 = vpop.permute.xlu0 %221
    %225 = vset.pattern.permute.xlu0 0
    %226 = vperm.xlu0 %225, %v214
    %v227 = vpop.permute.xlu0 %226
    %230 = vset.pattern.permute.xlu0 0
    %231 = vperm.xlu0 %230, %v215
    %v232 = vpop.permute.xlu0 %231
    %235 = vset.pattern.permute.xlu0 0
    %236 = vperm.xlu0 %235, %v216
    %v237 = vpop.permute.xlu0 %236
    %v241 = vlaneseq
    %v242 = vshrl.u32 %v241, 7
    %v243 = vsub.s32 0, %v242
    %v244 = vrot.slane %v217, %v243
    %v245 = vlaneseq
    %v246 = vshrl.u32 %v245, 7
    %v247 = vsub.s32 4, %v246
    %v248 = vrot.slane %v217, %v247
    %v249 = vlaneseq
    %v250 = vshrl.u32 %v249, 7
    %v251 = vsub.s32 0, %v250
    %v252 = vrot.slane %v218, %v251
    %v253 = vlaneseq
    %v254 = vshrl.u32 %v253, 7
    %v255 = vsub.s32 4, %v254
    %v256 = vrot.slane %v218, %v255
    %v261 = vlaneseq
    %v262 = vshrl.u32 %v261, 7
    %v263 = vsub.s32 0, %v262
    %v264 = vrot.slane %v244, %v263
    %v265 = vlaneseq
    %v266 = vshrl.u32 %v265, 7
    %v267 = vsub.s32 0, %v266
    %v268 = vrot.slane %v248, %v267
    %v269 = vlaneseq
    %v270 = vshrl.u32 %v269, 7
    %v271 = vsub.s32 0, %v270
    %v272 = vrot.slane %v252, %v271
    %v273 = vlaneseq
    %v274 = vshrl.u32 %v273, 7
    %v275 = vsub.s32 0, %v274
    %v276 = vrot.slane %v256, %v275
    %v277 = vmul.f32 %v222, %v264
    %v278 = vmul.f32 %v222, %v268
    %v279 = vmul.f32 %v222, %v272
    %v280 = vmul.f32 %v222, %v276
    %v281 = vmul.f32 %v227, %v264
    %v282 = vmul.f32 %v227, %v268
    %v283 = vmul.f32 %v227, %v272
    %v284 = vmul.f32 %v227, %v276
    %v285 = vmul.f32 %v232, %v264
    %v286 = vmul.f32 %v232, %v268
    %v287 = vmul.f32 %v232, %v272
    %v288 = vmul.f32 %v232, %v276
    %v289 = vmul.f32 %v237, %v264
    %v290 = vmul.f32 %v237, %v268
    %v291 = vmul.f32 %v237, %v272
    %v292 = vmul.f32 %v237, %v276
    %293 = vset.pattern.permute.xlu0 1
    %294 = vperm.xlu0 %293, %v213
    %v295 = vpop.permute.xlu0 %294
    %297 = vset.pattern.permute.xlu0 1
    %298 = vperm.xlu0 %297, %v214
    %v299 = vpop.permute.xlu0 %298
    %301 = vset.pattern.permute.xlu0 1
    %302 = vperm.xlu0 %301, %v215
    %v303 = vpop.permute.xlu0 %302
    %305 = vset.pattern.permute.xlu0 1
    %306 = vperm.xlu0 %305, %v216
    %v307 = vpop.permute.xlu0 %306
    %v309 = vlaneseq
    %v310 = vshrl.u32 %v309, 7
    %v311 = vsub.s32 1, %v310
    %v312 = vrot.slane %v217, %v311
    %v313 = vlaneseq
    %v314 = vshrl.u32 %v313, 7
    %v315 = vsub.s32 5, %v314
    %v316 = vrot.slane %v217, %v315
    %v317 = vlaneseq
    %v318 = vshrl.u32 %v317, 7
    %v319 = vsub.s32 1, %v318
    %v320 = vrot.slane %v218, %v319
    %v321 = vlaneseq
    %v322 = vshrl.u32 %v321, 7
    %v323 = vsub.s32 5, %v322
    %v324 = vrot.slane %v218, %v323
    %v329 = vlaneseq
    %v330 = vshrl.u32 %v329, 7
    %v331 = vsub.s32 1, %v330
    %v332 = vrot.slane %v312, %v331
    %v333 = vlaneseq
    %v334 = vshrl.u32 %v333, 7
    %v335 = vsub.s32 1, %v334
    %v336 = vrot.slane %v316, %v335
    %v337 = vlaneseq
    %v338 = vshrl.u32 %v337, 7
    %v339 = vsub.s32 1, %v338
    %v340 = vrot.slane %v320, %v339
    %v341 = vlaneseq
    %v342 = vshrl.u32 %v341, 7
    %v343 = vsub.s32 1, %v342
    %v344 = vrot.slane %v324, %v343
    %v345 = vmul.f32 %v295, %v332
    %v346 = vmul.f32 %v295, %v336
    %v347 = vmul.f32 %v295, %v340
    %v348 = vmul.f32 %v295, %v344
    %v349 = vmul.f32 %v299, %v332
    %v350 = vmul.f32 %v299, %v336
    %v351 = vmul.f32 %v299, %v340
    %v352 = vmul.f32 %v299, %v344
    %v353 = vmul.f32 %v303, %v332
    %v354 = vmul.f32 %v303, %v336
    %v355 = vmul.f32 %v303, %v340
    %v356 = vmul.f32 %v303, %v344
    %v357 = vmul.f32 %v307, %v332
    %v358 = vmul.f32 %v307, %v336
    %v359 = vmul.f32 %v307, %v340
    %v360 = vmul.f32 %v307, %v344
    %v361 = vadd.f32 %v277, %v345
    %v362 = vadd.f32 %v278, %v346
    %v363 = vadd.f32 %v279, %v347
    %v364 = vadd.f32 %v280, %v348
    %v365 = vadd.f32 %v281, %v349
    %v366 = vadd.f32 %v282, %v350
    %v367 = vadd.f32 %v283, %v351
    %v368 = vadd.f32 %v284, %v352
    %v369 = vadd.f32 %v285, %v353
    %v370 = vadd.f32 %v286, %v354
    %v371 = vadd.f32 %v287, %v355
    %v372 = vadd.f32 %v288, %v356
    %v373 = vadd.f32 %v289, %v357
    %v374 = vadd.f32 %v290, %v358
    %v375 = vadd.f32 %v291, %v359
    %v376 = vadd.f32 %v292, %v360
    %377 = vset.pattern.permute.xlu0 2
    %378 = vperm.xlu0 %377, %v213
    %v379 = vpop.permute.xlu0 %378
    %381 = vset.pattern.permute.xlu0 2
    %382 = vperm.xlu0 %381, %v214
    %v383 = vpop.permute.xlu0 %382
    %385 = vset.pattern.permute.xlu0 2
    %386 = vperm.xlu0 %385, %v215
    %v387 = vpop.permute.xlu0 %386
    %389 = vset.pattern.permute.xlu0 2
    %390 = vperm.xlu0 %389, %v216
    %v391 = vpop.permute.xlu0 %390
    %v393 = vlaneseq
    %v394 = vshrl.u32 %v393, 7
    %v395 = vsub.s32 2, %v394
    %v396 = vrot.slane %v217, %v395
    %v397 = vlaneseq
    %v398 = vshrl.u32 %v397, 7
    %v399 = vsub.s32 6, %v398
    %v400 = vrot.slane %v217, %v399
    %v401 = vlaneseq
    %v402 = vshrl.u32 %v401, 7
    %v403 = vsub.s32 2, %v402
    %v404 = vrot.slane %v218, %v403
    %v405 = vlaneseq
    %v406 = vshrl.u32 %v405, 7
    %v407 = vsub.s32 6, %v406
    %v408 = vrot.slane %v218, %v407
    %v413 = vlaneseq
    %v414 = vshrl.u32 %v413, 7
    %v415 = vsub.s32 2, %v414
    %v416 = vrot.slane %v396, %v415
    %v417 = vlaneseq
    %v418 = vshrl.u32 %v417, 7
    %v419 = vsub.s32 2, %v418
    %v420 = vrot.slane %v400, %v419
    %v421 = vlaneseq
    %v422 = vshrl.u32 %v421, 7
    %v423 = vsub.s32 2, %v422
    %v424 = vrot.slane %v404, %v423
    %v425 = vlaneseq
    %v426 = vshrl.u32 %v425, 7
    %v427 = vsub.s32 2, %v426
    %v428 = vrot.slane %v408, %v427
    %v429 = vmul.f32 %v379, %v416
    %v430 = vmul.f32 %v379, %v420
    %v431 = vmul.f32 %v379, %v424
    %v432 = vmul.f32 %v379, %v428
    %v433 = vmul.f32 %v383, %v416
    %v434 = vmul.f32 %v383, %v420
    %v435 = vmul.f32 %v383, %v424
    %v436 = vmul.f32 %v383, %v428
    %v437 = vmul.f32 %v387, %v416
    %v438 = vmul.f32 %v387, %v420
    %v439 = vmul.f32 %v387, %v424
    %v440 = vmul.f32 %v387, %v428
    %v441 = vmul.f32 %v391, %v416
    %v442 = vmul.f32 %v391, %v420
    %v443 = vmul.f32 %v391, %v424
    %v444 = vmul.f32 %v391, %v428
    %v445 = vadd.f32 %v361, %v429
    %v446 = vadd.f32 %v362, %v430
    %v447 = vadd.f32 %v363, %v431
    %v448 = vadd.f32 %v364, %v432
    %v449 = vadd.f32 %v365, %v433
    %v450 = vadd.f32 %v366, %v434
    %v451 = vadd.f32 %v367, %v435
    %v452 = vadd.f32 %v368, %v436
    %v453 = vadd.f32 %v369, %v437
    %v454 = vadd.f32 %v370, %v438
    %v455 = vadd.f32 %v371, %v439
    %v456 = vadd.f32 %v372, %v440
    %v457 = vadd.f32 %v373, %v441
    %v458 = vadd.f32 %v374, %v442
    %v459 = vadd.f32 %v375, %v443
    %v460 = vadd.f32 %v376, %v444
    %461 = vset.pattern.permute.xlu0 3
    %462 = vperm.xlu0 %461, %v213
    %v463 = vpop.permute.xlu0 %462
    %465 = vset.pattern.permute.xlu0 3
    %466 = vperm.xlu0 %465, %v214
    %v467 = vpop.permute.xlu0 %466
    %469 = vset.pattern.permute.xlu0 3
    %470 = vperm.xlu0 %469, %v215
    %v471 = vpop.permute.xlu0 %470
    %473 = vset.pattern.permute.xlu0 3
    %474 = vperm.xlu0 %473, %v216
    %v475 = vpop.permute.xlu0 %474
    %v477 = vlaneseq
    %v478 = vshrl.u32 %v477, 7
    %v479 = vsub.s32 3, %v478
    %v480 = vrot.slane %v217, %v479
    %v481 = vlaneseq
    %v482 = vshrl.u32 %v481, 7
    %v483 = vsub.s32 7, %v482
    %v484 = vrot.slane %v217, %v483
    %v485 = vlaneseq
    %v486 = vshrl.u32 %v485, 7
    %v487 = vsub.s32 3, %v486
    %v488 = vrot.slane %v218, %v487
    %v489 = vlaneseq
    %v490 = vshrl.u32 %v489, 7
    %v491 = vsub.s32 7, %v490
    %v492 = vrot.slane %v218, %v491
    %v497 = vlaneseq
    %v498 = vshrl.u32 %v497, 7
    %v499 = vsub.s32 3, %v498
    %v500 = vrot.slane %v480, %v499
    %v501 = vlaneseq
    %v502 = vshrl.u32 %v501, 7
    %v503 = vsub.s32 3, %v502
    %v504 = vrot.slane %v484, %v503
    %v505 = vlaneseq
    %v506 = vshrl.u32 %v505, 7
    %v507 = vsub.s32 3, %v506
    %v508 = vrot.slane %v488, %v507
    %v509 = vlaneseq
    %v510 = vshrl.u32 %v509, 7
    %v511 = vsub.s32 3, %v510
    %v512 = vrot.slane %v492, %v511
    %v513 = vmul.f32 %v463, %v500
    %v514 = vmul.f32 %v463, %v504
    %v515 = vmul.f32 %v463, %v508
    %v516 = vmul.f32 %v463, %v512
    %v517 = vmul.f32 %v467, %v500
    %v518 = vmul.f32 %v467, %v504
    %v519 = vmul.f32 %v467, %v508
    %v520 = vmul.f32 %v467, %v512
    %v521 = vmul.f32 %v471, %v500
    %v522 = vmul.f32 %v471, %v504
    %v523 = vmul.f32 %v471, %v508
    %v524 = vmul.f32 %v471, %v512
    %v525 = vmul.f32 %v475, %v500
    %v526 = vmul.f32 %v475, %v504
    %v527 = vmul.f32 %v475, %v508
    %v528 = vmul.f32 %v475, %v512
    %v529 = vadd.f32 %v445, %v513
    %v530 = vadd.f32 %v446, %v514
    %v531 = vadd.f32 %v447, %v515
    %v532 = vadd.f32 %v448, %v516
    %v533 = vadd.f32 %v449, %v517
    %v534 = vadd.f32 %v450, %v518
    %v535 = vadd.f32 %v451, %v519
    %v536 = vadd.f32 %v452, %v520
    %v537 = vadd.f32 %v453, %v521
    %v538 = vadd.f32 %v454, %v522
    %v539 = vadd.f32 %v455, %v523
    %v540 = vadd.f32 %v456, %v524
    %v541 = vadd.f32 %v457, %v525
    %v542 = vadd.f32 %v458, %v526
    %v543 = vadd.f32 %v459, %v527
    %v544 = vadd.f32 %v460, %v528
    %546 = vset.pattern.permute.xlu0 0
    %547 = vperm.xlu0 %546, %v205
    %v548 = vpop.permute.xlu0 %547
    %551 = vset.pattern.permute.xlu0 0
    %552 = vperm.xlu0 %551, %v206
    %v553 = vpop.permute.xlu0 %552
    %556 = vset.pattern.permute.xlu0 0
    %557 = vperm.xlu0 %556, %v207
    %v558 = vpop.permute.xlu0 %557
    %561 = vset.pattern.permute.xlu0 0
    %562 = vperm.xlu0 %561, %v208
    %v563 = vpop.permute.xlu0 %562
    %v565 = vadd.f32 %v529, %v548
    %v566 = vadd.f32 %v530, %v548
    %v567 = vadd.f32 %v531, %v548
    %v568 = vadd.f32 %v532, %v548
    %v569 = vadd.f32 %v533, %v553
    %v570 = vadd.f32 %v534, %v553
    %v571 = vadd.f32 %v535, %v553
    %v572 = vadd.f32 %v536, %v553
    %v573 = vadd.f32 %v537, %v558
    %v574 = vadd.f32 %v538, %v558
    %v575 = vadd.f32 %v539, %v558
    %v576 = vadd.f32 %v540, %v558
    %v577 = vadd.f32 %v541, %v563
    %v578 = vadd.f32 %v542, %v563
    %v579 = vadd.f32 %v543, %v563
    %v580 = vadd.f32 %v544, %v563
    %v581 = vmax.f32 %v565, 0.0
    %v582 = vmax.f32 %v566, 0.0
    %v583 = vmax.f32 %v567, 0.0
    %v584 = vmax.f32 %v568, 0.0
    %v585 = vmax.f32 %v569, 0.0
    %v586 = vmax.f32 %v570, 0.0
    %v587 = vmax.f32 %v571, 0.0
    %v588 = vmax.f32 %v572, 0.0
    %v589 = vmax.f32 %v573, 0.0
    %v590 = vmax.f32 %v574, 0.0
    %v591 = vmax.f32 %v575, 0.0
    %v592 = vmax.f32 %v576, 0.0
    %v593 = vmax.f32 %v577, 0.0
    %v594 = vmax.f32 %v578, 0.0
    %v595 = vmax.f32 %v579, 0.0
    %v596 = vmax.f32 %v580, 0.0
    %v597 = vld [vmem:[#allocation8] sm:$0xf]
    %v598 = vld [vmem:[#allocation8 + $0x4] sm:$0xf]
    %v599 = vld [vmem:[#allocation8 + $0x8] sm:$0xf]
    %v600 = vld [vmem:[#allocation8 + $0xc] sm:$0xf]
    %v601 = vpack.c.bf16 %v585, %v581
    %v602 = vpack.c.bf16 %v586, %v582
    %v603 = vpack.c.bf16 %v587, %v583
    %v604 = vpack.c.bf16 %v588, %v584
    %v605 = vpack.c.bf16 %v593, %v589
    %v606 = vpack.c.bf16 %v594, %v590
    %v607 = vpack.c.bf16 %v595, %v591
    %v608 = vpack.c.bf16 %v596, %v592
    %v609 = vld [vmem:[#allocation10] sm:$0xff]
    %v610 = vld [vmem:[#allocation10 + $0x8] sm:$0xff]
    %v611 = vld [vmem:[#allocation10 + $0x10] sm:$0xff]
    %v612 = vld [vmem:[#allocation10 + $0x18] sm:$0xff]
    %614 = vset.pattern.permute.xlu0 0
    %615 = vperm.xlu0 %614, %v609
    %v616 = vpop.permute.xlu0 %615
    %619 = vset.pattern.permute.xlu0 0
    %620 = vperm.xlu0 %619, %v610
    %v621 = vpop.permute.xlu0 %620
    %624 = vset.pattern.permute.xlu0 0
    %625 = vperm.xlu0 %624, %v611
    %v626 = vpop.permute.xlu0 %625
    %629 = vset.pattern.permute.xlu0 0
    %630 = vperm.xlu0 %629, %v612
    %v631 = vpop.permute.xlu0 %630
    %v637 = vunpack.c.l.b16 %v597
    %v638 = vunpack.c.l.b16 %v598
    %v639 = vunpack.c.l.b16 %v599
    %v640 = vunpack.c.l.b16 %v600
    %v641 = vpack.c.b16 %v638, %v637
    %v642 = vpack.c.b16 %v640, %v639
    %vm643 = vcmask 261120
    %v645 = vsel %vm643, %v641, 0
    %v648 = vsel %vm643, %v642, 0
    %650 = vmatprep.subr.bf16.mxu0 %v602
    %651 = vmatpush1.bf16.msra.mxu0 %v601
    %652 = vmatprep.subr.bf16.mxu0 %v606
    %653 = vmatpush1.bf16.msra.mxu0 %v605
    %654 = vmatprep.subr.bf16.mxu0 0
    %655 = vmatpush1.bf16.msra.mxu0 0
    %656 = vmatprep.subr.bf16.mxu0 0
    %657 = vmatpush1.bf16.msra.mxu0 0
    %658 = vmatprep.subr.bf16.mxu0 0
    %659 = vmatpush1.bf16.msra.mxu0 0
    %660 = vmatprep.subr.bf16.mxu0 0
    %661 = vmatpush1.bf16.msra.mxu0 0
    %662 = vmatprep.subr.bf16.mxu0 0
    %663 = vmatpush1.bf16.msra.mxu0 0
    %664 = vmatprep.subr.bf16.mxu0 0
    %665 = vmatpush1.bf16.msra.mxu0 0
    %666 = vmatprep.subr.bf16.mxu0 0
    %667 = vmatpush1.bf16.msra.mxu0 0
    %668 = vmatprep.subr.bf16.mxu0 0
    %669 = vmatpush1.bf16.msra.mxu0 0
    %670 = vmatprep.subr.bf16.mxu0 0
    %671 = vmatpush1.bf16.msra.mxu0 0
    %672 = vmatprep.subr.bf16.mxu0 0
    %673 = vmatpush1.bf16.msra.mxu0 0
    %674 = vmatprep.subr.bf16.mxu0 0
    %675 = vmatpush1.bf16.msra.mxu0 0
    %676 = vmatprep.subr.bf16.mxu0 0
    %677 = vmatpush1.bf16.msra.mxu0 0
    %678 = vmatprep.subr.bf16.mxu0 0
    %679 = vmatpush1.bf16.msra.mxu0 0
    %680 = vmatprep.subr.bf16.mxu0 0
    %681 = vmatpush1.bf16.msra.mxu0 0
    %682 = vmatprep.mubr.bf16.mxu0 0
    %683 = vmatmul.mubr.bf16.gmra.mrb[0].mxu0 %v645
    %v684 = vpop.f32.mrb[0].mxu0
    %v685 = vadd.f32 %v616, %v684
    %v686 = vpop.f32.mrb[0].mxu0
    %v687 = vadd.f32 %v616, %v686
    %v688 = vpop.f32.mrb[0].mxu0
    %v689 = vadd.f32 %v621, %v688
    %v690 = vpop.f32.mrb[0].mxu0
    %v691 = vadd.f32 %v621, %v690
    %692 = vmatprep.mubr.bf16.mxu0 0
    %693 = vmatmul.mubr.bf16.gmra.mrb[0].mxu0 %v648
    %v694 = vpop.f32.mrb[0].mxu0
    %v695 = vadd.f32 %v626, %v694
    %v696 = vpop.f32.mrb[0].mxu0
    %v697 = vadd.f32 %v626, %v696
    %v698 = vpop.f32.mrb[0].mxu0
    %v699 = vadd.f32 %v631, %v698
    %v700 = vpop.f32.mrb[0].mxu0
    %v701 = vadd.f32 %v631, %v700
    %702 = vdwg.mxu0
    %703 = vmatprep.subr.bf16.mxu0 %v604
    %704 = vmatpush1.bf16.msra.mxu0 %v603
    %705 = vmatprep.subr.bf16.mxu0 %v608
    %706 = vmatpush1.bf16.msra.mxu0 %v607
    %707 = vmatprep.subr.bf16.mxu0 0
    %708 = vmatpush1.bf16.msra.mxu0 0
    %709 = vmatprep.subr.bf16.mxu0 0
    %710 = vmatpush1.bf16.msra.mxu0 0
    %711 = vmatprep.subr.bf16.mxu0 0
    %712 = vmatpush1.bf16.msra.mxu0 0
    %713 = vmatprep.subr.bf16.mxu0 0
    %714 = vmatpush1.bf16.msra.mxu0 0
    %715 = vmatprep.subr.bf16.mxu0 0
    %716 = vmatpush1.bf16.msra.mxu0 0
    %717 = vmatprep.subr.bf16.mxu0 0
    %718 = vmatpush1.bf16.msra.mxu0 0
    %719 = vmatprep.subr.bf16.mxu0 0
    %720 = vmatpush1.bf16.msra.mxu0 0
    %721 = vmatprep.subr.bf16.mxu0 0
    %722 = vmatpush1.bf16.msra.mxu0 0
    %723 = vmatprep.subr.bf16.mxu0 0
    %724 = vmatpush1.bf16.msra.mxu0 0
    %725 = vmatprep.subr.bf16.mxu0 0
    %726 = vmatpush1.bf16.msra.mxu0 0
    %727 = vmatprep.subr.bf16.mxu0 0
    %728 = vmatpush1.bf16.msra.mxu0 0
    %729 = vmatprep.subr.bf16.mxu0 0
    %730 = vmatpush1.bf16.msra.mxu0 0
    %731 = vmatprep.subr.bf16.mxu0 0
    %732 = vmatpush1.bf16.msra.mxu0 0
    %733 = vmatprep.subr.bf16.mxu0 0
    %734 = vmatpush1.bf16.msra.mxu0 0
    %735 = vmatprep.mubr.bf16.mxu0 0
    %736 = vmatmul.mubr.bf16.gmra.mrb[0].mxu0 %v645
    %v737 = vpop.f32.mrb[0].mxu0
    %v738 = vadd.f32 %v616, %v737
    %v739 = vpop.f32.mrb[0].mxu0
    %v740 = vadd.f32 %v616, %v739
    %v741 = vpop.f32.mrb[0].mxu0
    %v742 = vadd.f32 %v621, %v741
    %v743 = vpop.f32.mrb[0].mxu0
    %v744 = vadd.f32 %v621, %v743
    %745 = vmatprep.mubr.bf16.mxu0 0
    %746 = vmatmul.mubr.bf16.gmra.mrb[0].mxu0 %v648
    %v747 = vpop.f32.mrb[0].mxu0
    %v748 = vadd.f32 %v626, %v747
    %v749 = vpop.f32.mrb[0].mxu0
    %v750 = vadd.f32 %v626, %v749
    %v751 = vpop.f32.mrb[0].mxu0
    %v752 = vadd.f32 %v631, %v751
    %v753 = vpop.f32.mrb[0].mxu0
    %v754 = vadd.f32 %v631, %v753
    %755 = vdwg.mxu0
    %v756 = vmax.f32 %v685, 0.0
    %v757 = vmax.f32 %v687, 0.0
    %v758 = vmax.f32 %v738, 0.0
    %v759 = vmax.f32 %v740, 0.0
    %v760 = vmax.f32 %v689, 0.0
    %v761 = vmax.f32 %v691, 0.0
    %v762 = vmax.f32 %v742, 0.0
    %v763 = vmax.f32 %v744, 0.0
    %v764 = vmax.f32 %v695, 0.0
    %v765 = vmax.f32 %v697, 0.0
    %v766 = vmax.f32 %v748, 0.0
    %v767 = vmax.f32 %v750, 0.0
    %v768 = vmax.f32 %v699, 0.0
    %v769 = vmax.f32 %v701, 0.0
    %v770 = vmax.f32 %v752, 0.0
    %v771 = vmax.f32 %v754, 0.0
    %v772 = vmax.f32 %v756, %v757
    %773 = vmax.xlane.f32.xlu0 %v772
    %v774 = vpop.xlane.xlu0 %773
    %v775 = vmax.f32 %v760, %v761
    %776 = vmax.xlane.f32.xlu0 %v775
    %v777 = vpop.xlane.xlu0 %776
    %v778 = vmax.f32 %v764, %v765
    %779 = vmax.xlane.f32.xlu0 %v778
    %v780 = vpop.xlane.xlu0 %779
    %v781 = vmax.f32 %v768, %v769
    %782 = vmax.xlane.f32.xlu0 %v781
    %v783 = vpop.xlane.xlu0 %782
    %v784 = vmax.f32 %v758, %v759
    %785 = vmax.xlane.f32.xlu0 %v784
    %v786 = vpop.xlane.xlu0 %785
    %v787 = vmax.f32 %v762, %v763
    %788 = vmax.xlane.f32.xlu0 %v787
    %v789 = vpop.xlane.xlu0 %788
    %v790 = vmax.f32 %v766, %v767
    %791 = vmax.xlane.f32.xlu0 %v790
    %v792 = vpop.xlane.xlu0 %791
    %v793 = vmax.f32 %v770, %v771
    %794 = vmax.xlane.f32.xlu0 %v793
    %v795 = vpop.xlane.xlu0 %794
    %vm796 = vcmask 7168
    %v797 = vsel %vm796, %v774, %v786
    %v798 = vsel %vm796, %v777, %v789
    %v799 = vsel %vm796, %v780, %v792
    %v800 = vsel %vm796, %v783, %v795
    %v801 = vld [vmem:[#allocation11] sm:$0xff]
    %v802 = vld [vmem:[#allocation11 + $0x8] sm:$0xff]
    %v803 = vld [vmem:[#allocation11 + $0x10] sm:$0xff]
    %v804 = vld [vmem:[#allocation11 + $0x18] sm:$0xff]
    %v805 = vld [vmem:[#allocation13] sm:$0xff]
    %v806 = vld [vmem:[#allocation13 + $0x8] sm:$0xff]
    %v807 = vld [vmem:[#allocation13 + $0x10] sm:$0xff]
    %v808 = vld [vmem:[#allocation13 + $0x18] sm:$0xff]
    %810 = vset.pattern.permute.xlu0 0
    %811 = vperm.xlu0 %810, %v805
    %v812 = vpop.permute.xlu0 %811
    %815 = vset.pattern.permute.xlu0 0
    %816 = vperm.xlu0 %815, %v806
    %v817 = vpop.permute.xlu0 %816
    %820 = vset.pattern.permute.xlu0 0
    %821 = vperm.xlu0 %820, %v807
    %v822 = vpop.permute.xlu0 %821
    %825 = vset.pattern.permute.xlu0 0
    %826 = vperm.xlu0 %825, %v808
    %v827 = vpop.permute.xlu0 %826
    %v830 = vsel %vm643, %v801, 0
    %v833 = vsel %vm643, %v802, 0
    %v836 = vsel %vm643, %v803, 0
    %v839 = vsel %vm643, %v804, 0
    %841 = vmatprep.subr.mxu0 0.0
    %842 = vmatpush1.msra.mxu0 %v797
    %843 = vmatprep.subr.mxu0 0.0
    %844 = vmatpush1.msra.mxu0 %v798
    %845 = vmatprep.subr.mxu0 0.0
    %846 = vmatpush1.msra.mxu0 %v799
    %847 = vmatprep.subr.mxu0 0.0
    %848 = vmatpush1.msra.mxu0 %v800
    %849 = vmatprep.subr.mxu0 0.0
    %850 = vmatpush1.msra.mxu0 0.0
    %851 = vmatprep.subr.mxu0 0.0
    %852 = vmatpush1.msra.mxu0 0.0
    %853 = vmatprep.subr.mxu0 0.0
    %854 = vmatpush1.msra.mxu0 0.0
    %855 = vmatprep.subr.mxu0 0.0
    %856 = vmatpush1.msra.mxu0 0.0
    %857 = vmatprep.subr.mxu0 0.0
    %858 = vmatpush1.msra.mxu0 0.0
    %859 = vmatprep.subr.mxu0 0.0
    %860 = vmatpush1.msra.mxu0 0.0
    %861 = vmatprep.subr.mxu0 0.0
    %862 = vmatpush1.msra.mxu0 0.0
    %863 = vmatprep.subr.mxu0 0.0
    %864 = vmatpush1.msra.mxu0 0.0
    %865 = vmatprep.subr.mxu0 0.0
    %866 = vmatpush1.msra.mxu0 0.0
    %867 = vmatprep.subr.mxu0 0.0
    %868 = vmatpush1.msra.mxu0 0.0
    %869 = vmatprep.subr.mxu0 0.0
    %870 = vmatpush1.msra.mxu0 0.0
    %871 = vmatprep.subr.mxu0 0.0
    %872 = vmatpush1.msra.mxu0 0.0
    %873 = vmatprep.subr.mxu0 0.0
    %874 = vmatpush1.msra.mxu0 0.0
    %875 = vmatprep.subr.mxu0 0.0
    %876 = vmatpush1.msra.mxu0 0.0
    %877 = vmatprep.subr.mxu0 0.0
    %878 = vmatpush1.msra.mxu0 0.0
    %879 = vmatprep.subr.mxu0 0.0
    %880 = vmatpush1.msra.mxu0 0.0
    %881 = vmatprep.subr.mxu0 0.0
    %882 = vmatpush1.msra.mxu0 0.0
    %883 = vmatprep.subr.mxu0 0.0
    %884 = vmatpush1.msra.mxu0 0.0
    %885 = vmatprep.subr.mxu0 0.0
    %886 = vmatpush1.msra.mxu0 0.0
    %887 = vmatprep.subr.mxu0 0.0
    %888 = vmatpush1.msra.mxu0 0.0
    %889 = vmatprep.subr.mxu0 0.0
    %890 = vmatpush1.msra.mxu0 0.0
    %891 = vmatprep.subr.mxu0 0.0
    %892 = vmatpush1.msra.mxu0 0.0
    %893 = vmatprep.subr.mxu0 0.0
    %894 = vmatpush1.msra.mxu0 0.0
    %895 = vmatprep.subr.mxu0 0.0
    %896 = vmatpush1.msra.mxu0 0.0
    %897 = vmatprep.subr.mxu0 0.0
    %898 = vmatpush1.msra.mxu0 0.0
    %899 = vmatprep.subr.mxu0 0.0
    %900 = vmatpush1.msra.mxu0 0.0
    %901 = vmatprep.subr.mxu0 0.0
    %902 = vmatpush1.msra.mxu0 0.0
    %903 = vmatprep.subr.mxu0 0.0
    %904 = vmatpush1.msra.mxu0 0.0
    %905 = vmatprep.mubr.f32.mxu0 0.0
    %906 = vmatmul.mubr.f32.gmra.mrb[0].mxu0 %v830
    %v907 = vpop.f32.mrb[0].mxu0
    %v908 = vadd.f32 %v812, %v907
    %v909 = vpop.f32.mrb[0].mxu0
    %910 = vmatprep.mubr.f32.mxu0 0.0
    %911 = vmatmul.mubr.f32.gmra.mrb[0].mxu0 %v833
    %v912 = vpop.f32.mrb[0].mxu0
    %v913 = vadd.f32 %v817, %v912
    %v914 = vpop.f32.mrb[0].mxu0
    %915 = vmatprep.mubr.f32.mxu0 0.0
    %916 = vmatmul.mubr.f32.gmra.mrb[0].mxu0 %v836
    %v917 = vpop.f32.mrb[0].mxu0
    %v918 = vadd.f32 %v822, %v917
    %v919 = vpop.f32.mrb[0].mxu0
    %920 = vmatprep.mubr.f32.mxu0 0.0
    %921 = vmatmul.mubr.f32.gmra.mrb[0].mxu0 %v839
    %v922 = vpop.f32.mrb[0].mxu0
    %v923 = vadd.f32 %v827, %v922
    %v924 = vpop.f32.mrb[0].mxu0
    %925 = vdwg.mxu0
    %v926 = vmax.f32 %v908, 0.0
    %v927 = vmax.f32 %v913, 0.0
    %v928 = vmax.f32 %v918, 0.0
    %v929 = vmax.f32 %v923, 0.0
    %v930 = vld [vmem:[#allocation14] sm:$0xff]
    %v931 = vld [vmem:[#allocation14 + $0x8] sm:$0xff]
    %v932 = vld [vmem:[#allocation14 + $0x10] sm:$0xff]
    %v933 = vld [vmem:[#allocation14 + $0x18] sm:$0xff]
    %v934 = vld [vmem:[#allocation16] sm:$0xff]
    %v935 = vld [vmem:[#allocation16 + $0x8] sm:$0xff]
    %v936 = vld [vmem:[#allocation16 + $0x10] sm:$0xff]
    %v937 = vld [vmem:[#allocation16 + $0x18] sm:$0xff]
    %939 = vset.pattern.permute.xlu0 0
    %940 = vperm.xlu0 %939, %v934
    %v941 = vpop.permute.xlu0 %940
    %944 = vset.pattern.permute.xlu0 0
    %945 = vperm.xlu0 %944, %v935
    %v946 = vpop.permute.xlu0 %945
    %949 = vset.pattern.permute.xlu0 0
    %950 = vperm.xlu0 %949, %v936
    %v951 = vpop.permute.xlu0 %950
    %954 = vset.pattern.permute.xlu0 0
    %955 = vperm.xlu0 %954, %v937
    %v956 = vpop.permute.xlu0 %955
    %v959 = vsel %vm643, %v930, 0
    %v962 = vsel %vm643, %v931, 0
    %v965 = vsel %vm643, %v932, 0
    %v968 = vsel %vm643, %v933, 0
    %970 = vmatprep.subr.mxu0 0.0
    %971 = vmatpush1.msra.mxu0 %v926
    %972 = vmatprep.subr.mxu0 0.0
    %973 = vmatpush1.msra.mxu0 %v927
    %974 = vmatprep.subr.mxu0 0.0
    %975 = vmatpush1.msra.mxu0 %v928
    %976 = vmatprep.subr.mxu0 0.0
    %977 = vmatpush1.msra.mxu0 %v929
    %978 = vmatprep.subr.mxu0 0.0
    %979 = vmatpush1.msra.mxu0 0.0
    %980 = vmatprep.subr.mxu0 0.0
    %981 = vmatpush1.msra.mxu0 0.0
    %982 = vmatprep.subr.mxu0 0.0
    %983 = vmatpush1.msra.mxu0 0.0
    %984 = vmatprep.subr.mxu0 0.0
    %985 = vmatpush1.msra.mxu0 0.0
    %986 = vmatprep.subr.mxu0 0.0
    %987 = vmatpush1.msra.mxu0 0.0
    %988 = vmatprep.subr.mxu0 0.0
    %989 = vmatpush1.msra.mxu0 0.0
    %990 = vmatprep.subr.mxu0 0.0
    %991 = vmatpush1.msra.mxu0 0.0
    %992 = vmatprep.subr.mxu0 0.0
    %993 = vmatpush1.msra.mxu0 0.0
    %994 = vmatprep.subr.mxu0 0.0
    %995 = vmatpush1.msra.mxu0 0.0
    %996 = vmatprep.subr.mxu0 0.0
    %997 = vmatpush1.msra.mxu0 0.0
    %998 = vmatprep.subr.mxu0 0.0
    %999 = vmatpush1.msra.mxu0 0.0
    %1000 = vmatprep.subr.mxu0 0.0
    %1001 = vmatpush1.msra.mxu0 0.0
    %1002 = vmatprep.subr.mxu0 0.0
    %1003 = vmatpush1.msra.mxu0 0.0
    %1004 = vmatprep.subr.mxu0 0.0
    %1005 = vmatpush1.msra.mxu0 0.0
    %1006 = vmatprep.subr.mxu0 0.0
    %1007 = vmatpush1.msra.mxu0 0.0
    %1008 = vmatprep.subr.mxu0 0.0
    %1009 = vmatpush1.msra.mxu0 0.0
    %1010 = vmatprep.subr.mxu0 0.0
    %1011 = vmatpush1.msra.mxu0 0.0
    %1012 = vmatprep.subr.mxu0 0.0
    %1013 = vmatpush1.msra.mxu0 0.0
    %1014 = vmatprep.subr.mxu0 0.0
    %1015 = vmatpush1.msra.mxu0 0.0
    %1016 = vmatprep.subr.mxu0 0.0
    %1017 = vmatpush1.msra.mxu0 0.0
    %1018 = vmatprep.subr.mxu0 0.0
    %1019 = vmatpush1.msra.mxu0 0.0
    %1020 = vmatprep.subr.mxu0 0.0
    %1021 = vmatpush1.msra.mxu0 0.0
    %1022 = vmatprep.subr.mxu0 0.0
    %1023 = vmatpush1.msra.mxu0 0.0
    %1024 = vmatprep.subr.mxu0 0.0
    %1025 = vmatpush1.msra.mxu0 0.0
    %1026 = vmatprep.subr.mxu0 0.0
    %1027 = vmatpush1.msra.mxu0 0.0
    %1028 = vmatprep.subr.mxu0 0.0
    %1029 = vmatpush1.msra.mxu0 0.0
    %1030 = vmatprep.subr.mxu0 0.0
    %1031 = vmatpush1.msra.mxu0 0.0
    %1032 = vmatprep.subr.mxu0 0.0
    %1033 = vmatpush1.msra.mxu0 0.0
    %1034 = vmatprep.mubr.f32.mxu0 0.0
    %1035 = vmatmul.mubr.f32.gmra.mrb[0].mxu0 %v959
    %v1036 = vpop.f32.mrb[0].mxu0
    %v1037 = vadd.f32 %v941, %v1036
    %v1038 = vpop.f32.mrb[0].mxu0
    %1039 = vmatprep.mubr.f32.mxu0 0.0
    %1040 = vmatmul.mubr.f32.gmra.mrb[0].mxu0 %v962
    %v1041 = vpop.f32.mrb[0].mxu0
    %v1042 = vadd.f32 %v946, %v1041
    %v1043 = vpop.f32.mrb[0].mxu0
    %1044 = vmatprep.mubr.f32.mxu0 0.0
    %1045 = vmatmul.mubr.f32.gmra.mrb[0].mxu0 %v965
    %v1046 = vpop.f32.mrb[0].mxu0
    %v1047 = vadd.f32 %v951, %v1046
    %v1048 = vpop.f32.mrb[0].mxu0
    %1049 = vmatprep.mubr.f32.mxu0 0.0
    %1050 = vmatmul.mubr.f32.gmra.mrb[0].mxu0 %v968
    %v1051 = vpop.f32.mrb[0].mxu0
    %v1052 = vadd.f32 %v956, %v1051
    %v1053 = vpop.f32.mrb[0].mxu0
    %1054 = vdwg.mxu0
    %v1055 = vmax.f32 %v1037, 0.0
    %v1056 = vmax.f32 %v1042, 0.0
    %v1057 = vmax.f32 %v1047, 0.0
    %v1058 = vmax.f32 %v1052, 0.0
    %v1059 = vld [vmem:[#allocation17] sm:$0xff]
    %v1060 = vld [vmem:[#allocation17 + $0x8] sm:$0xff]
    %v1061 = vld [vmem:[#allocation19] sm:$0xff]
    %v1062 = vld [vmem:[#allocation19 + $0x8] sm:$0xff]
    %1064 = vset.pattern.permute.xlu0 0
    %1065 = vperm.xlu0 %1064, %v1061
    %v1066 = vpop.permute.xlu0 %1065
    %1069 = vset.pattern.permute.xlu0 0
    %1070 = vperm.xlu0 %1069, %v1062
    %v1071 = vpop.permute.xlu0 %1070
    %v1074 = vsel %vm643, %v1059, 0
    %v1077 = vsel %vm643, %v1060, 0
    %1079 = vmatprep.subr.mxu0 0.0
    %1080 = vmatpush1.msra.mxu0 %v1055
    %1081 = vmatprep.subr.mxu0 0.0
    %1082 = vmatpush1.msra.mxu0 %v1056
    %1083 = vmatprep.subr.mxu0 0.0
    %1084 = vmatpush1.msra.mxu0 %v1057
    %1085 = vmatprep.subr.mxu0 0.0
    %1086 = vmatpush1.msra.mxu0 %v1058
    %1087 = vmatprep.subr.mxu0 0.0
    %1088 = vmatpush1.msra.mxu0 0.0
    %1089 = vmatprep.subr.mxu0 0.0
    %1090 = vmatpush1.msra.mxu0 0.0
    %1091 = vmatprep.subr.mxu0 0.0
    %1092 = vmatpush1.msra.mxu0 0.0
    %1093 = vmatprep.subr.mxu0 0.0
    %1094 = vmatpush1.msra.mxu0 0.0
    %1095 = vmatprep.subr.mxu0 0.0
    %1096 = vmatpush1.msra.mxu0 0.0
    %1097 = vmatprep.subr.mxu0 0.0
    %1098 = vmatpush1.msra.mxu0 0.0
    %1099 = vmatprep.subr.mxu0 0.0
    %1100 = vmatpush1.msra.mxu0 0.0
    %1101 = vmatprep.subr.mxu0 0.0
    %1102 = vmatpush1.msra.mxu0 0.0
    %1103 = vmatprep.subr.mxu0 0.0
    %1104 = vmatpush1.msra.mxu0 0.0
    %1105 = vmatprep.subr.mxu0 0.0
    %1106 = vmatpush1.msra.mxu0 0.0
    %1107 = vmatprep.subr.mxu0 0.0
    %1108 = vmatpush1.msra.mxu0 0.0
    %1109 = vmatprep.subr.mxu0 0.0
    %1110 = vmatpush1.msra.mxu0 0.0
    %1111 = vmatprep.subr.mxu0 0.0
    %1112 = vmatpush1.msra.mxu0 0.0
    %1113 = vmatprep.subr.mxu0 0.0
    %1114 = vmatpush1.msra.mxu0 0.0
    %1115 = vmatprep.subr.mxu0 0.0
    %1116 = vmatpush1.msra.mxu0 0.0
    %1117 = vmatprep.subr.mxu0 0.0
    %1118 = vmatpush1.msra.mxu0 0.0
    %1119 = vmatprep.subr.mxu0 0.0
    %1120 = vmatpush1.msra.mxu0 0.0
    %1121 = vmatprep.subr.mxu0 0.0
    %1122 = vmatpush1.msra.mxu0 0.0
    %1123 = vmatprep.subr.mxu0 0.0
    %1124 = vmatpush1.msra.mxu0 0.0
    %1125 = vmatprep.subr.mxu0 0.0
    %1126 = vmatpush1.msra.mxu0 0.0
    %1127 = vmatprep.subr.mxu0 0.0
    %1128 = vmatpush1.msra.mxu0 0.0
    %1129 = vmatprep.subr.mxu0 0.0
    %1130 = vmatpush1.msra.mxu0 0.0
    %1131 = vmatprep.subr.mxu0 0.0
    %1132 = vmatpush1.msra.mxu0 0.0
    %1133 = vmatprep.subr.mxu0 0.0
    %1134 = vmatpush1.msra.mxu0 0.0
    %1135 = vmatprep.subr.mxu0 0.0
    %1136 = vmatpush1.msra.mxu0 0.0
    %1137 = vmatprep.subr.mxu0 0.0
    %1138 = vmatpush1.msra.mxu0 0.0
    %1139 = vmatprep.subr.mxu0 0.0
    %1140 = vmatpush1.msra.mxu0 0.0
    %1141 = vmatprep.subr.mxu0 0.0
    %1142 = vmatpush1.msra.mxu0 0.0
    %1143 = vmatprep.mubr.f32.mxu0 0.0
    %1144 = vmatmul.mubr.f32.gmra.mrb[0].mxu0 %v1074
    %v1145 = vpop.f32.mrb[0].mxu0
    %v1146 = vadd.f32 %v1066, %v1145
    %v1147 = vpop.f32.mrb[0].mxu0
    %1148 = vmatprep.mubr.f32.mxu0 0.0
    %1149 = vmatmul.mubr.f32.gmra.mrb[0].mxu0 %v1077
    %v1150 = vpop.f32.mrb[0].mxu0
    %v1151 = vadd.f32 %v1071, %v1150
    %v1152 = vpop.f32.mrb[0].mxu0
    %1153 = vdwg.mxu0
    %v1154 = vld [vmem:[#allocation20] sm:$0xff]
    %v1155 = vld [vmem:[#allocation20 + $0x8] sm:$0xff]
    %1157 = vset.pattern.permute.xlu0 0
    %1158 = vperm.xlu0 %1157, %v1154
    %v1159 = vpop.permute.xlu0 %1158
    %1162 = vset.pattern.permute.xlu0 0
    %1163 = vperm.xlu0 %1162, %v1155
    %v1164 = vpop.permute.xlu0 %1163
    %v1166 = vadd.f32 %v1146, %v1159
    %v1167 = vadd.f32 %v1151, %v1164
    %vm1168 = vcmask 15360
    %1169 = vst.msk [vmem:[#allocation22] sm:$0xff] %vm1168, %v1166
    %1170 = vst.msk [vmem:[#allocation22 + $0x8] sm:$0xff] %vm1168, %v1167
    // Predicated region
    $region98: #{tpu_custom_call.1} parent=1 // pred_check
      _
    $region99: #{tpu_custom_call.1} parent=1 // pred_check_branch
      %1172 = sbr.rel (0) target = $region101
    $region100: #{tpu_custom_call.1} parent=1 // pred_region
      %s1174 = ssub.s32 256, 256
      %1175 = vsyncadd [#allocation4], %s1174
      %s1176 = sshll.u32 [#allocation22], 4
      %s1177 = int_to_ptr.vmem [resolvable:$true] %s1176
      %1182 = dma.vmem_to_hbm [thread:$0]  %s1177, 256, %s12, [#allocation4], 128, 128, 8
    $region101: #{tpu_custom_call.1} parent=1 // pred_fallthru
      _
    // Predicated region
    $region102: #{tpu_custom_call.1} parent=1 // pred_check
      _
    $region103: #{tpu_custom_call.1} parent=1 // pred_check_branch
      %1184 = sbr.rel (0) target = $region105
    $region104: #{tpu_custom_call.1} parent=1 // pred_region
      %1185 = dma.done [#allocation4], 256
    $region105: #{tpu_custom_call.1} parent=1 // pred_fallthru
      _
    %1186 = vsyncpa [#allocation3], 1
    %1187 = vsyncpa [#allocation6], 1
    %1188 = vsyncpa [#allocation9], 1
    %1189 = vsyncpa [#allocation12], 1
    %1190 = vsyncpa [#allocation15], 1
    %1191 = vsyncpa [#allocation18], 1
    %1192 = vsyncpa [#allocation21], 1
    %1193 = vsyncpa [#allocation4], 1

</llo_original>
